<compile_context>
chip_gen: v7x
topology: tpu7x:2x2x1
jax: 0.10.0
libtpu: 0.0.40
codegen_flags: <defaults>
</compile_context>

<pallas_src>
import jax
import jax.numpy as jnp
from jax.experimental import pallas as pl
from jax.experimental.pallas import tpu as pltpu

PARAMS = dict(
    in_channel=16,
    hidden_channel=32,
    out_channel=8,
    num_layers_input=2,
    num_layers=2,
    chunk_size=8,
    dropout_rate=0.5,
    dropout_rate2='None',
    global_gating=False,
    model='GONN',          # != 'ONGNN'  ->  self.convs is empty in __init__
)

LN_EPS = 1e-5
LANES = 128          # weights padded to the vreg lane width (in-kernel only)
MAX_TILE_N = 2048    # row tile for large graphs


def _round_up(n, m):
    return ((n + m - 1) // m) * m


# ---------------------------------------------------------------------------
# Fused kernel: all input layers (Linear+ReLU+LayerNorm) + final Linear
# Ref order: x, [w_i]*n_in_layers, w_out, vec_pack, out
# vec_pack rows: [b0, gamma0, beta0, b1, gamma1, beta1, ..., b_out, 0-pad]
# ---------------------------------------------------------------------------
def make_gonn_kernel(n_in_layers, c_hidden, c_out, eps):
    inv_h = 1.0 / float(c_hidden)

    def kernel(*refs):
        x_ref = refs[0]
        w_refs = refs[1:1 + n_in_layers]
        w_out_ref = refs[1 + n_in_layers]
        vec_ref = refs[2 + n_in_layers]
        o_ref = refs[3 + n_in_layers]

        vecs = vec_ref[...]                                     # (8, 128) f32
        # Lane mask for the real hidden channels (hoisted; reused every layer).
        lane = jax.lax.broadcasted_iota(jnp.int32, (1, LANES), 1)
        lane_valid = lane < c_hidden

        h = x_ref[...]                                          # (tile_n, c_in)
        for li in range(n_in_layers):
            b = vecs[3 * li + 0:3 * li + 1, :]
            g = vecs[3 * li + 1:3 * li + 2, :]
            beta = vecs[3 * li + 2:3 * li + 3, :]
            # Linear + bias (padded W cols / b lanes are zero -> padded lanes 0)
            h = jnp.dot(h, w_refs[li][...],
                        preferred_element_type=jnp.float32) + b
            # ReLU
            h = jnp.maximum(h, 0.0)
            # LayerNorm over the real c_hidden lanes (padded lanes of h are 0,
            # so the lane-sum over 128 lanes equals the sum over the real 32).
            mean = jnp.sum(h, axis=-1, keepdims=True) * inv_h
            diff = jnp.where(lane_valid, h - mean, 0.0)         # masked center
            var = jnp.sum(diff * diff, axis=-1, keepdims=True) * inv_h
            scale = g * jax.lax.rsqrt(var + eps)                # gamma folded
            h = diff * scale + beta                             # padded lanes stay 0

        b_out = vecs[3 * n_in_layers:3 * n_in_layers + 1, :c_out]
        o_ref[...] = (
            jnp.dot(h, w_out_ref[...], preferred_element_type=jnp.float32)
            + b_out
        )

    return kernel


# ---------------------------------------------------------------------------
# Weight padding helper
# ---------------------------------------------------------------------------
def _pad_mat(w, rows, cols):
    out = jnp.zeros((rows, cols), jnp.float32)
    return out.at[: w.shape[0], : w.shape[1]].set(w)


# ---------------------------------------------------------------------------
# Deterministic parameter construction (shapes per GONN.__init__)
# ---------------------------------------------------------------------------
def init_weights(params, key):
    keys = jax.random.split(key, 16)
    kidx = 0

    def nxt():
        nonlocal kidx
        k = keys[kidx]
        kidx += 1
        return k

    hid = params['hidden_channel']

    # linear_trans_in: Linear(in, hid), then (num_layers_input-1) x Linear(hid, hid)
    trans_in = []
    dims = [params['in_channel']] + [hid] * params['num_layers_input']
    for li in range(params['num_layers_input']):
        cin, cout = dims[li], dims[li + 1]
        w = jax.random.normal(nxt(), (cin, cout), jnp.float32) * 0.1
        b = jax.random.normal(nxt(), (cout,), jnp.float32) * 0.01
        gamma = jnp.ones((cout,), jnp.float32)
        beta = jnp.zeros((cout,), jnp.float32)
        trans_in.append((w, b, gamma, beta))

    # linear_trans_out: Linear(hid, out)
    out_w = jax.random.normal(nxt(), (hid, params['out_channel']), jnp.float32) * 0.1
    out_b = jax.random.normal(nxt(), (params['out_channel'],), jnp.float32) * 0.01

    # tm_net params exist in the module but are unused in this forward
    # (convs is empty); created only for shape fidelity.
    tm_net = []
    for _ in range(params['num_layers']):
        tw = jax.random.normal(nxt(), (2 * hid, params['chunk_size']), jnp.float32) * 0.1
        tb = jnp.zeros((params['chunk_size'],), jnp.float32)
        tm_net.append((tw, tb))

    return dict(trans_in=trans_in, out_w=out_w, out_b=out_b, tm_net=tm_net)


# ---------------------------------------------------------------------------
# Forward (eval mode: dropout == identity) -- one fused pallas_call
# ---------------------------------------------------------------------------
def gonn_forward(params, weights, x, edge_index):
    del edge_index  # only consumed by ONGNNConv, which is absent here
    N, c_in = x.shape
    c_hid = params['hidden_channel']
    c_out = params['out_channel']
    n_in_layers = params['num_layers_input']

    x = x.astype(jnp.float32)

    # Row tile: big tiles for large graphs; for moderate N cap at ~ceil(N/2)
    # so the "parallel" row axis has >= 2 steps (both v7x TensorCores busy).
    tile_n = min(MAX_TILE_N, max(8, _round_up(pl.cdiv(N, 2), 8)))
    n_tiles = pl.cdiv(N, tile_n)

    # Lane-padded weights (tiny; ride along as full-block VMEM inputs).
    w_pads = []
    row_dims = [c_in] + [LANES] * (n_in_layers - 1)
    for li, (w, _, _, _) in enumerate(weights['trans_in']):
        w_pads.append(_pad_mat(w, row_dims[li], LANES))
    w_out_pad = _pad_mat(weights['out_w'], LANES, c_out)

    # Pack all bias/gamma/beta vectors + b_out into one (8,128) block.
    n_vec_rows = _round_up(3 * n_in_layers + 1, 8)
    vec_pack = jnp.zeros((n_vec_rows, LANES), jnp.float32)
    for li, (_, b, gamma, beta) in enumerate(weights['trans_in']):
        vec_pack = vec_pack.at[3 * li + 0, : b.shape[0]].set(b)
        vec_pack = vec_pack.at[3 * li + 1, : gamma.shape[0]].set(gamma)
        vec_pack = vec_pack.at[3 * li + 2, : beta.shape[0]].set(beta)
    vec_pack = vec_pack.at[3 * n_in_layers, :c_out].set(weights['out_b'])

    in_specs = [pl.BlockSpec((tile_n, c_in), lambda i: (i, 0))]
    in_specs += [pl.BlockSpec(tuple(w.shape), lambda i: (0, 0)) for w in w_pads]
    in_specs += [
        pl.BlockSpec((LANES, c_out), lambda i: (0, 0)),
        pl.BlockSpec((n_vec_rows, LANES), lambda i: (0, 0)),
    ]

    kernel = make_gonn_kernel(n_in_layers, c_hid, c_out, LN_EPS)

    # Advisory cost estimate (real bytes, not padded).
    flops = 2 * N * (c_in * c_hid
                     + (n_in_layers - 1) * c_hid * c_hid
                     + c_hid * c_out)
    weight_bytes = 4 * (sum(int(w.size) for w in w_pads)
                        + LANES * c_out + n_vec_rows * LANES)
    cost = pl.CostEstimate(
        flops=flops,
        transcendentals=N * n_in_layers,
        bytes_accessed=4 * N * (c_in + c_out) + weight_bytes,
    )

    out = pl.pallas_call(
        kernel,
        out_shape=jax.ShapeDtypeStruct((N, c_out), jnp.float32),
        grid=(n_tiles,),
        in_specs=in_specs,
        out_specs=pl.BlockSpec((tile_n, c_out), lambda i: (i, 0)),
        compiler_params=pltpu.CompilerParams(
            dimension_semantics=("parallel",),
        ),
        cost_estimate=cost,
    )(x, *w_pads, w_out_pad, vec_pack)

    check_signal = []   # convs loop is empty (model != 'ONGNN')
    tm_signal = jnp.zeros((params['chunk_size'],), dtype=out.dtype)  # noqa: F841

    return dict(x=out, check_signal=check_signal)


# ---------------------------------------------------------------------------
# Pure-JAX reference (for correctness verification)
# ---------------------------------------------------------------------------
def gonn_reference(params, weights, x):
    h = x
    for (w, b, gamma, beta) in weights['trans_in']:
        h = jnp.maximum(h @ w + b, 0.0)
        mean = jnp.mean(h, axis=-1, keepdims=True)
        var = jnp.mean((h - mean) ** 2, axis=-1, keepdims=True)
        h = (h - mean) / jnp.sqrt(var + LN_EPS) * gamma + beta
    return h @ weights['out_w'] + weights['out_b']


# ---------------------------------------------------------------------------
if __name__ == "__main__":
    key = jax.random.PRNGKey(0)
    k_x, k_e, k_w = jax.random.split(key, 3)

    N = 64  # number of graph nodes (small demo; gives a 2-step parallel grid)
    x = jax.random.normal(k_x, (N, PARAMS['in_channel']), jnp.float32)
    edge_index = jax.random.randint(k_e, (2, 2 * N), 0, N, jnp.int32)

    weights = init_weights(PARAMS, k_w)

    out = gonn_forward(PARAMS, weights, x, edge_index)
    jax.block_until_ready(out['x'])

    assert out['x'].shape == (N, PARAMS['out_channel'])
    assert out['x'].dtype == jnp.float32

    ref = gonn_reference(PARAMS, weights, x)
    assert jnp.allclose(out['x'], ref, rtol=1e-4, atol=1e-4), (
        float(jnp.max(jnp.abs(out['x'] - ref)))
    )

    print("KERNEL_OK")
</pallas_src>

<mosaic_0001>
module attributes {stable_mosaic.version = 11 : i64} {
  func.func @kernel(%arg0: i32, %arg1: memref<32x16xf32, #tpu.memory_space<vmem>>, %arg2: memref<16x128xf32, #tpu.memory_space<vmem>>, %arg3: memref<128x128xf32, #tpu.memory_space<vmem>>, %arg4: memref<128x8xf32, #tpu.memory_space<vmem>>, %arg5: memref<8x128xf32, #tpu.memory_space<vmem>>, %arg6: memref<32x8xf32, #tpu.memory_space<vmem>>) attributes {dimension_semantics = [#tpu.dimension_semantics<parallel>], iteration_bounds = array<i64: 2>, scalar_prefetch = 0 : i64, scratch_operands = 0 : i64, tpu.core_type = #tpu.core_type<tc>, window_params = [{transform_indices = @transform_0, window_bounds = array<i64: 32, 16>}, {pipeline_mode = #tpu.pipeline_mode<synchronous>, transform_indices = @transform_1, window_bounds = array<i64: 16, 128>}, {pipeline_mode = #tpu.pipeline_mode<synchronous>, transform_indices = @transform_2, window_bounds = array<i64: 128, 128>}, {pipeline_mode = #tpu.pipeline_mode<synchronous>, transform_indices = @transform_3, window_bounds = array<i64: 128, 8>}, {pipeline_mode = #tpu.pipeline_mode<synchronous>, transform_indices = @transform_4, window_bounds = array<i64: 8, 128>}, {transform_indices = @transform_5, window_bounds = array<i64: 32, 8>}]} {
    %c0 = arith.constant 0 : index
    %c0_0 = arith.constant 0 : index
    %0 = vector.load %arg5[%c0, %c0_0] : memref<8x128xf32, #tpu.memory_space<vmem>>, vector<8x128xf32>
    %1 = tpu.iota {dimensions = array<i32: 1>} : vector<1x128xi32>
    %c32_i32 = arith.constant 32 : i32
    %2 = vector.broadcast %c32_i32 : i32 to vector<1x128xi32>
    %3 = arith.cmpi slt, %1, %2 : vector<1x128xi32>
    %c0_1 = arith.constant 0 : index
    %c0_2 = arith.constant 0 : index
    %4 = vector.load %arg1[%c0_1, %c0_2] : memref<32x16xf32, #tpu.memory_space<vmem>>, vector<32x16xf32>
    %5 = vector.extract_strided_slice %0 {offsets = [0, 0], sizes = [1, 128], strides = [1, 1]} : vector<8x128xf32> to vector<1x128xf32>
    %6 = vector.extract_strided_slice %0 {offsets = [1, 0], sizes = [1, 128], strides = [1, 1]} : vector<8x128xf32> to vector<1x128xf32>
    %7 = vector.extract_strided_slice %0 {offsets = [2, 0], sizes = [1, 128], strides = [1, 1]} : vector<8x128xf32> to vector<1x128xf32>
    %c0_3 = arith.constant 0 : index
    %c0_4 = arith.constant 0 : index
    %8 = vector.load %arg2[%c0_3, %c0_4] : memref<16x128xf32, #tpu.memory_space<vmem>>, vector<16x128xf32>
    %cst = arith.constant dense<0.000000e+00> : vector<32x128xf32>
    %9 = tpu.matmul %4, %8, %cst {dimension_numbers = #tpu.dot_dimension_numbers<[1], [0], [0], [1], [0, 0, 1, 1], [], []>} : vector<32x16xf32>, vector<16x128xf32>, vector<32x128xf32> -> vector<32x128xf32>
    %10 = vector.broadcast %5 : vector<1x128xf32> to vector<32x128xf32>
    %11 = arith.addf %9, %10 : vector<32x128xf32>
    %cst_5 = arith.constant 0.000000e+00 : f32
    %12 = vector.broadcast %cst_5 : f32 to vector<32x128xf32>
    %13 = arith.maximumf %11, %12 : vector<32x128xf32>
    %cst_6 = arith.constant dense<0.000000e+00> : vector<32xf32>
    %14 = vector.multi_reduction <add>, %13, %cst_6 [1] : vector<32x128xf32> to vector<32xf32>
    %15 = vector.shape_cast %14 : vector<32xf32> to vector<32x1xf32>
    %cst_7 = arith.constant 3.125000e-02 : f32
    %16 = vector.broadcast %cst_7 : f32 to vector<32x1xf32>
    %17 = arith.mulf %15, %16 : vector<32x1xf32>
    %18 = vector.broadcast %17 : vector<32x1xf32> to vector<32x128xf32>
    %19 = arith.subf %13, %18 : vector<32x128xf32>
    %cst_8 = arith.constant 0.000000e+00 : f32
    %20 = vector.shape_cast %3 : vector<1x128xi1> to vector<1x128xi1>
    %21 = vector.broadcast %20 : vector<1x128xi1> to vector<32x128xi1>
    %22 = vector.broadcast %cst_8 : f32 to vector<32x128xf32>
    %23 = arith.select %21, %19, %22 : vector<32x128xi1>, vector<32x128xf32>
    %24 = arith.mulf %23, %23 : vector<32x128xf32>
    %cst_9 = arith.constant dense<0.000000e+00> : vector<32xf32>
    %25 = vector.multi_reduction <add>, %24, %cst_9 [1] : vector<32x128xf32> to vector<32xf32>
    %26 = vector.shape_cast %25 : vector<32xf32> to vector<32x1xf32>
    %cst_10 = arith.constant 3.125000e-02 : f32
    %27 = vector.broadcast %cst_10 : f32 to vector<32x1xf32>
    %28 = arith.mulf %26, %27 : vector<32x1xf32>
    %cst_11 = arith.constant 9.99999974E-6 : f32
    %29 = vector.broadcast %cst_11 : f32 to vector<32x1xf32>
    %30 = arith.addf %28, %29 : vector<32x1xf32>
    %31 = math.rsqrt %30 : vector<32x1xf32>
    %32 = vector.broadcast %6 : vector<1x128xf32> to vector<32x128xf32>
    %33 = vector.broadcast %31 : vector<32x1xf32> to vector<32x128xf32>
    %34 = arith.mulf %32, %33 : vector<32x128xf32>
    %35 = arith.mulf %23, %34 : vector<32x128xf32>
    %36 = vector.broadcast %7 : vector<1x128xf32> to vector<32x128xf32>
    %37 = arith.addf %35, %36 : vector<32x128xf32>
    %38 = vector.extract_strided_slice %0 {offsets = [3, 0], sizes = [1, 128], strides = [1, 1]} : vector<8x128xf32> to vector<1x128xf32>
    %39 = vector.extract_strided_slice %0 {offsets = [4, 0], sizes = [1, 128], strides = [1, 1]} : vector<8x128xf32> to vector<1x128xf32>
    %40 = vector.extract_strided_slice %0 {offsets = [5, 0], sizes = [1, 128], strides = [1, 1]} : vector<8x128xf32> to vector<1x128xf32>
    %c0_12 = arith.constant 0 : index
    %c0_13 = arith.constant 0 : index
    %41 = vector.load %arg3[%c0_12, %c0_13] : memref<128x128xf32, #tpu.memory_space<vmem>>, vector<128x128xf32>
    %cst_14 = arith.constant dense<0.000000e+00> : vector<32x128xf32>
    %42 = tpu.matmul %37, %41, %cst_14 {dimension_numbers = #tpu.dot_dimension_numbers<[1], [0], [0], [1], [0, 0, 1, 1], [], []>} : vector<32x128xf32>, vector<128x128xf32>, vector<32x128xf32> -> vector<32x128xf32>
    %43 = vector.broadcast %38 : vector<1x128xf32> to vector<32x128xf32>
    %44 = arith.addf %42, %43 : vector<32x128xf32>
    %cst_15 = arith.constant 0.000000e+00 : f32
    %45 = vector.broadcast %cst_15 : f32 to vector<32x128xf32>
    %46 = arith.maximumf %44, %45 : vector<32x128xf32>
    %cst_16 = arith.constant dense<0.000000e+00> : vector<32xf32>
    %47 = vector.multi_reduction <add>, %46, %cst_16 [1] : vector<32x128xf32> to vector<32xf32>
    %48 = vector.shape_cast %47 : vector<32xf32> to vector<32x1xf32>
    %cst_17 = arith.constant 3.125000e-02 : f32
    %49 = vector.broadcast %cst_17 : f32 to vector<32x1xf32>
    %50 = arith.mulf %48, %49 : vector<32x1xf32>
    %51 = vector.broadcast %50 : vector<32x1xf32> to vector<32x128xf32>
    %52 = arith.subf %46, %51 : vector<32x128xf32>
    %cst_18 = arith.constant 0.000000e+00 : f32
    %53 = vector.shape_cast %3 : vector<1x128xi1> to vector<1x128xi1>
    %54 = vector.broadcast %53 : vector<1x128xi1> to vector<32x128xi1>
    %55 = vector.broadcast %cst_18 : f32 to vector<32x128xf32>
    %56 = arith.select %54, %52, %55 : vector<32x128xi1>, vector<32x128xf32>
    %57 = arith.mulf %56, %56 : vector<32x128xf32>
    %cst_19 = arith.constant dense<0.000000e+00> : vector<32xf32>
    %58 = vector.multi_reduction <add>, %57, %cst_19 [1] : vector<32x128xf32> to vector<32xf32>
    %59 = vector.shape_cast %58 : vector<32xf32> to vector<32x1xf32>
    %cst_20 = arith.constant 3.125000e-02 : f32
    %60 = vector.broadcast %cst_20 : f32 to vector<32x1xf32>
    %61 = arith.mulf %59, %60 : vector<32x1xf32>
    %cst_21 = arith.constant 9.99999974E-6 : f32
    %62 = vector.broadcast %cst_21 : f32 to vector<32x1xf32>
    %63 = arith.addf %61, %62 : vector<32x1xf32>
    %64 = math.rsqrt %63 : vector<32x1xf32>
    %65 = vector.broadcast %39 : vector<1x128xf32> to vector<32x128xf32>
    %66 = vector.broadcast %64 : vector<32x1xf32> to vector<32x128xf32>
    %67 = arith.mulf %65, %66 : vector<32x128xf32>
    %68 = arith.mulf %56, %67 : vector<32x128xf32>
    %69 = vector.broadcast %40 : vector<1x128xf32> to vector<32x128xf32>
    %70 = arith.addf %68, %69 : vector<32x128xf32>
    %71 = vector.extract_strided_slice %0 {offsets = [6, 0], sizes = [1, 8], strides = [1, 1]} : vector<8x128xf32> to vector<1x8xf32>
    %c0_22 = arith.constant 0 : index
    %c0_23 = arith.constant 0 : index
    %72 = vector.load %arg4[%c0_22, %c0_23] : memref<128x8xf32, #tpu.memory_space<vmem>>, vector<128x8xf32>
    %cst_24 = arith.constant dense<0.000000e+00> : vector<32x8xf32>
    %73 = tpu.matmul %70, %72, %cst_24 {dimension_numbers = #tpu.dot_dimension_numbers<[1], [0], [0], [1], [0, 0, 1, 1], [], []>} : vector<32x128xf32>, vector<128x8xf32>, vector<32x8xf32> -> vector<32x8xf32>
    %74 = vector.broadcast %71 : vector<1x8xf32> to vector<32x8xf32>
    %75 = arith.addf %73, %74 : vector<32x8xf32>
    %c0_25 = arith.constant 0 : index
    %c0_26 = arith.constant 0 : index
    %76 = vector.load %arg6[%c0_25, %c0_26] : memref<32x8xf32, #tpu.memory_space<vmem>>, vector<32x8xf32>
    tpu.vector_store %arg6[%c0_25, %c0_26], %75 {strides = array<i32>} : memref<32x8xf32, #tpu.memory_space<vmem>>, vector<32x8xf32>,
    return
  }
  func.func @transform_0(%arg0: i32) -> (i32, i32) {
    %c0_i32 = arith.constant 0 : i32
    %c0_i32_0 = arith.constant 0 : i32
    return %arg0, %c0_i32 : i32, i32
  }
  func.func @transform_1(%arg0: i32) -> (i32, i32) {
    %c0_i32 = arith.constant 0 : i32
    %c0_i32_0 = arith.constant 0 : i32
    %c0_i32_1 = arith.constant 0 : i32
    return %c0_i32, %c0_i32_0 : i32, i32
  }
  func.func @transform_2(%arg0: i32) -> (i32, i32) {
    %c0_i32 = arith.constant 0 : i32
    %c0_i32_0 = arith.constant 0 : i32
    %c0_i32_1 = arith.constant 0 : i32
    return %c0_i32, %c0_i32_0 : i32, i32
  }
  func.func @transform_3(%arg0: i32) -> (i32, i32) {
    %c0_i32 = arith.constant 0 : i32
    %c0_i32_0 = arith.constant 0 : i32
    %c0_i32_1 = arith.constant 0 : i32
    return %c0_i32, %c0_i32_0 : i32, i32
  }
  func.func @transform_4(%arg0: i32) -> (i32, i32) {
    %c0_i32 = arith.constant 0 : i32
    %c0_i32_0 = arith.constant 0 : i32
    %c0_i32_1 = arith.constant 0 : i32
    return %c0_i32, %c0_i32_0 : i32, i32
  }
  func.func @transform_5(%arg0: i32) -> (i32, i32) {
    %c0_i32 = arith.constant 0 : i32
    %c0_i32_0 = arith.constant 0 : i32
    return %arg0, %c0_i32 : i32, i32
  }
}

</mosaic_0001>

<llo_original>
// kernel: tpu_custom_call.1
$region0: #{tpu_custom_call.1}
  #allocation0 [shape = 'u32[]', space=smem, size = 0x4, offset = 0x4, fixed_abs, tag = 'smem constant byte address 0x4 - core index']
  #allocation1 [shape = 'u32[144,128]{1,0:T(1,128)}', space=vmem, size = 0x12000, scoped, tag = 'internal scratch']
  %s0 = inlined_call_operand.vmem [shape: f32[64,16], index: 0, kind: input, shape index: {}]
  %s1 = inlined_call_operand.vmem [shape: f32[16,128], index: 1, kind: input, shape index: {}]
  %s2 = inlined_call_operand.vmem [shape: f32[128,128], index: 2, kind: input, shape index: {}]
  %s3 = inlined_call_operand.vmem [shape: f32[128,8], index: 3, kind: input, shape index: {}]
  %s4 = inlined_call_operand.vmem [shape: f32[8,128], index: 4, kind: input, shape index: {}]
  %s5 = inlined_call_operand.vmem [shape: f32[64,8], index: 5, kind: output, shape index: {}]
  %s6 = sld [smem:[#allocation0]]
  $region53: #{tpu_custom_call.1} parent=0
    _
  %s8 = ssub.s32 1, %s6
  %s9 = scalar_select 0, %s8, %s6
  loop: start=0, step=1, limit=4
  $region2: #{tpu_custom_call.1} parent=0 // loop_pre_header
    _
  $region3: #{tpu_custom_call.1} parent=0 // loop_header
    %s11 = sphi 0, %s15
    %p12 = scmp.ge.s32.totalorder %s11, 4
    %s21 = sphi 0, %s23
    %s24 = sphi 0, %s21
    %s25 = sphi 0, %s24
    %s41 = sphi 0, %s25
    %s45 = sphi 0, %s45
    %s47 = sphi 0, %s45
    %s48 = sphi 0, %s47
    %s62 = sphi 0, %s48
    %s66 = sphi 0, %s66
    %s68 = sphi 0, %s66
    %s69 = sphi 0, %s68
    %s83 = sphi 0, %s69
    %s87 = sphi 0, %s87
    %s89 = sphi 0, %s87
    %s90 = sphi 0, %s89
    %s104 = sphi 0, %s90
    %s108 = sphi 0, %s108
    %s110 = sphi 0, %s108
    %s111 = sphi 0, %s110
    %s125 = sphi 0, %s111
    %s131 = sphi 0, %s133
    %s134 = sphi 0, %s131
    %s135 = sphi 0, %s134
    %s151 = sphi 0, %s135
  $region4: #{tpu_custom_call.1} parent=0 // loop_header_branch
    %14 = sbr.rel (%p12) target = $region8
  $region5: #{tpu_custom_call.1} parent=0 // loop_body
    %s16 = ssub.s32 %s11, 1
    %s17 = ssub.s32 %s11, 2
    %s18 = sadd.s32 %s11, 1
    %s19 = ssub.s32 %s11, %s18
    %p20 = scmp.eq.s32.totalorder %s19, 0
    %s22 = sadd.s32 %s21, 1
    %s23 = scalar_select %p20, %s21, %s22
    %p26 = pneg %p20
    %p27 = scmp.eq.s32.totalorder %s11, 1
    %p28 = por %p26, %p27
    %p29 = scmp.ne.s32.totalorder %s21, %s24
    %p30 = scmp.eq.s32.totalorder %s11, 0
    %p31 = por %p29, %p30
    %p32 = scmp.ne.s32.totalorder %s21, %s24
    %p33 = scmp.eq.s32.totalorder %s16, 1
    %p34 = por %p32, %p33
    %p35 = scmp.ne.s32.totalorder %s24, %s25
    %p36 = scmp.eq.s32.totalorder %s16, 0
    %p37 = por %p35, %p36
    %p38 = scmp.ne.s32.totalorder %s24, %s25
    %p39 = scmp.eq.s32.totalorder %s17, 1
    %p40 = por %p38, %p39
    %p42 = scmp.ne.s32.totalorder %s25, %s41
    %p43 = scmp.eq.s32.totalorder %s17, 0
    %p44 = por %p42, %p43
    %s46 = sadd.s32 %s45, 1
    %p49 = scmp.eq.s32.totalorder %s11, 1
    %p50 = scmp.ne.s32.totalorder %s45, %s47
    %p51 = scmp.eq.s32.totalorder %s11, 0
    %p52 = por %p50, %p51
    %p53 = scmp.ne.s32.totalorder %s45, %s47
    %p54 = scmp.eq.s32.totalorder %s16, 1
    %p55 = por %p53, %p54
    %p56 = scmp.ne.s32.totalorder %s47, %s48
    %p57 = scmp.eq.s32.totalorder %s16, 0
    %p58 = por %p56, %p57
    %p59 = scmp.ne.s32.totalorder %s47, %s48
    %p60 = scmp.eq.s32.totalorder %s17, 1
    %p61 = por %p59, %p60
    %p63 = scmp.ne.s32.totalorder %s48, %s62
    %p64 = scmp.eq.s32.totalorder %s17, 0
    %p65 = por %p63, %p64
    %s67 = sadd.s32 %s66, 1
    %p70 = scmp.eq.s32.totalorder %s11, 1
    %p71 = scmp.ne.s32.totalorder %s66, %s68
    %p72 = scmp.eq.s32.totalorder %s11, 0
    %p73 = por %p71, %p72
    %p74 = scmp.ne.s32.totalorder %s66, %s68
    %p75 = scmp.eq.s32.totalorder %s16, 1
    %p76 = por %p74, %p75
    %p77 = scmp.ne.s32.totalorder %s68, %s69
    %p78 = scmp.eq.s32.totalorder %s16, 0
    %p79 = por %p77, %p78
    %p80 = scmp.ne.s32.totalorder %s68, %s69
    %p81 = scmp.eq.s32.totalorder %s17, 1
    %p82 = por %p80, %p81
    %p84 = scmp.ne.s32.totalorder %s69, %s83
    %p85 = scmp.eq.s32.totalorder %s17, 0
    %p86 = por %p84, %p85
    %s88 = sadd.s32 %s87, 1
    %p91 = scmp.eq.s32.totalorder %s11, 1
    %p92 = scmp.ne.s32.totalorder %s87, %s89
    %p93 = scmp.eq.s32.totalorder %s11, 0
    %p94 = por %p92, %p93
    %p95 = scmp.ne.s32.totalorder %s87, %s89
    %p96 = scmp.eq.s32.totalorder %s16, 1
    %p97 = por %p95, %p96
    %p98 = scmp.ne.s32.totalorder %s89, %s90
    %p99 = scmp.eq.s32.totalorder %s16, 0
    %p100 = por %p98, %p99
    %p101 = scmp.ne.s32.totalorder %s89, %s90
    %p102 = scmp.eq.s32.totalorder %s17, 1
    %p103 = por %p101, %p102
    %p105 = scmp.ne.s32.totalorder %s90, %s104
    %p106 = scmp.eq.s32.totalorder %s17, 0
    %p107 = por %p105, %p106
    %s109 = sadd.s32 %s108, 1
    %p112 = scmp.eq.s32.totalorder %s11, 1
    %p113 = scmp.ne.s32.totalorder %s108, %s110
    %p114 = scmp.eq.s32.totalorder %s11, 0
    %p115 = por %p113, %p114
    %p116 = scmp.ne.s32.totalorder %s108, %s110
    %p117 = scmp.eq.s32.totalorder %s16, 1
    %p118 = por %p116, %p117
    %p119 = scmp.ne.s32.totalorder %s110, %s111
    %p120 = scmp.eq.s32.totalorder %s16, 0
    %p121 = por %p119, %p120
    %p122 = scmp.ne.s32.totalorder %s110, %s111
    %p123 = scmp.eq.s32.totalorder %s17, 1
    %p124 = por %p122, %p123
    %p126 = scmp.ne.s32.totalorder %s111, %s125
    %p127 = scmp.eq.s32.totalorder %s17, 0
    %p128 = por %p126, %p127
    %s129 = ssub.s32 %s11, %s18
    %p130 = scmp.eq.s32.totalorder %s129, 0
    %s132 = sadd.s32 %s131, 1
    %s133 = scalar_select %p130, %s131, %s132
    %p136 = pneg %p130
    %p137 = scmp.eq.s32.totalorder %s11, 1
    %p138 = por %p136, %p137
    %p139 = scmp.ne.s32.totalorder %s131, %s134
    %p140 = scmp.eq.s32.totalorder %s11, 0
    %p141 = por %p139, %p140
    %p142 = scmp.ne.s32.totalorder %s131, %s134
    %p143 = scmp.eq.s32.totalorder %s16, 1
    %p144 = por %p142, %p143
    %p145 = scmp.ne.s32.totalorder %s134, %s135
    %p146 = scmp.eq.s32.totalorder %s16, 0
    %p147 = por %p145, %p146
    %p148 = scmp.ne.s32.totalorder %s134, %s135
    %p149 = scmp.eq.s32.totalorder %s17, 1
    %p150 = por %p148, %p149
    %p152 = scmp.ne.s32.totalorder %s135, %s151
    %p153 = scmp.eq.s32.totalorder %s17, 0
    %p154 = por %p152, %p153
    %p155 = scmp.le.s32.totalorder 1, %s11
    %p156 = scmp.lt.s32.totalorder %s11, 3
    %p157 = pnand %p155, %p156
    %p158 = pneg %p157
    // Predicated region
    $region9: #{tpu_custom_call.1} parent=5 // pred_check
      _
    $region10: #{tpu_custom_call.1} parent=5 // pred_check_branch
      %160 = sbr.rel (%p157) target = $region12
    $region11: #{tpu_custom_call.1} parent=5 // pred_region
      %s161 = ssub.s32 %s11, 1
      // Predicated region
      $region13: #{tpu_custom_call.1} parent=11 // pred_check
        %p162 = pneg %p58
      $region14: #{tpu_custom_call.1} parent=11 // pred_check_branch
        %164 = sbr.rel (%p162) target = $region16
      $region15: #{tpu_custom_call.1} parent=11 // pred_region
        _
      $region16: #{tpu_custom_call.1} parent=11 // pred_fallthru
        _
      // Predicated region
      $region17: #{tpu_custom_call.1} parent=11 // pred_check
        %p165 = pneg %p79
      $region18: #{tpu_custom_call.1} parent=11 // pred_check_branch
        %167 = sbr.rel (%p165) target = $region20
      $region19: #{tpu_custom_call.1} parent=11 // pred_region
        _
      $region20: #{tpu_custom_call.1} parent=11 // pred_fallthru
        _
      // Predicated region
      $region21: #{tpu_custom_call.1} parent=11 // pred_check
        %p168 = pneg %p100
      $region22: #{tpu_custom_call.1} parent=11 // pred_check_branch
        %170 = sbr.rel (%p168) target = $region24
      $region23: #{tpu_custom_call.1} parent=11 // pred_region
        _
      $region24: #{tpu_custom_call.1} parent=11 // pred_fallthru
        _
      // Predicated region
      $region25: #{tpu_custom_call.1} parent=11 // pred_check
        %p171 = pneg %p121
      $region26: #{tpu_custom_call.1} parent=11 // pred_check_branch
        %173 = sbr.rel (%p171) target = $region28
      $region27: #{tpu_custom_call.1} parent=11 // pred_region
        _
      $region28: #{tpu_custom_call.1} parent=11 // pred_fallthru
        _
    $region12: #{tpu_custom_call.1} parent=5 // pred_fallthru
      _
    %p174 = scmp.lt.s32.totalorder %s11, 2
    // Predicated region
    $region29: #{tpu_custom_call.1} parent=5 // pred_check
      %p175 = pneg %p174
    $region30: #{tpu_custom_call.1} parent=5 // pred_check_branch
      %177 = sbr.rel (%p175) target = $region32
    $region31: #{tpu_custom_call.1} parent=5 // pred_region
      // Predicated region
      $region33: #{tpu_custom_call.1} parent=31 // pred_check
        %p178 = pneg %p31
      $region34: #{tpu_custom_call.1} parent=31 // pred_check_branch
        %180 = sbr.rel (%p178) target = $region36
      $region35: #{tpu_custom_call.1} parent=31 // pred_region
        %s181 = smul.u32 4, %s11
        %p182 = scmp.lt.s32.totalorder %s181, 7
        %s183 = scalar_select %p182, %s181, 7
        %s184 = smul.addr %s183, 8
        %s185 = scalar_lea.vmem %s0, %s184
        %s186 = smul.u32 4, %s11
      $region36: #{tpu_custom_call.1} parent=31 // pred_fallthru
        _
    $region32: #{tpu_custom_call.1} parent=5 // pred_fallthru
      _
    %p187 = scmp.le.s32.totalorder 1, %s11
    %p188 = scmp.lt.s32.totalorder %s11, 3
    %p189 = pnand %p187, %p188
    %p190 = pneg %p189
    // Predicated region
    $region37: #{tpu_custom_call.1} parent=5 // pred_check
      _
    $region38: #{tpu_custom_call.1} parent=5 // pred_check_branch
      %192 = sbr.rel (%p189) target = $region40
    $region39: #{tpu_custom_call.1} parent=5 // pred_region
      %s193 = ssub.s32 %s11, 1
      %s194 = smul.u32 4, %s16
      %p195 = scmp.lt.s32.totalorder %s194, 7
      %s196 = scalar_select %p195, %s194, 7
      %s197 = smul.addr %s196, 8
      %s198 = scalar_lea.vmem %s0, %s197
      %p199 = pneg %p37
      %p200 = pneg %p34
      %p201 = pneg %p58
      %p202 = pneg %p55
      %p203 = pneg %p79
      %p204 = pneg %p76
      %p205 = pneg %p100
      %p206 = pneg %p97
      %p207 = pneg %p121
      %p208 = pneg %p118
      %p209 = pneg %p147
      %p210 = pneg %p144
      %s211 = smul.u32 4, %s16
      %p212 = scmp.lt.s32.totalorder %s211, 7
      %s213 = scalar_select %p212, %s211, 7
      %s214 = smul.addr %s213, 8
      %s215 = scalar_lea.vmem %s5, %s214
      %s216 = smul.u32 4, %s16
      %p217 = scmp.lt.s32.totalorder %s216, 7
      %s218 = scalar_select %p217, %s216, 7
      %s219 = smul.addr %s218, 8
      %s220 = scalar_lea.vmem %s0, %s219
      %s221 = smul.u32 4, %s16
      %s222 = smul.u32 4, %s16
      %p223 = scmp.lt.s32.totalorder %s222, 7
      %s224 = scalar_select %p223, %s222, 7
      %s225 = smul.addr %s224, 8
      %s226 = scalar_lea.vmem %s5, %s225
      %s227 = smul.u32 4, %s16
      %v228 = vld [vmem:[%s4] sm:$0xff]
      %v229 = vlaneseq
      %v230 = vand.u32 %v229, 127
      %vm231 = vcmp.lt.s32.totalorder %v230, 32
      %v232 = vld [vmem:[%s220] sm:$0xff]
      %v233 = vld [vmem:[%s220 + $0x8] sm:$0xff]
      %v234 = vld [vmem:[%s220 + $0x10] sm:$0xff]
      %v235 = vld [vmem:[%s220 + $0x18] sm:$0xff]
      %v236 = vld [vmem:[%s1] sm:$0xff]
      %v237 = vld [vmem:[%s1 + $0x8] sm:$0xff]
      %v238 = vlaneseq
      %v239 = vshrl.u32 %v238, 7
      %v240 = vsub.s32 0, %v239
      %v241 = vrot.slane %v228, %v240
      %vm242 = vcmask 130048
      %v244 = vsel %vm242, %v232, 0
      %v247 = vsel %vm242, %v233, 0
      %v250 = vsel %vm242, %v234, 0
      %v253 = vsel %vm242, %v235, 0
      %255 = vmatprep.subr.mxu0 0.0
      %256 = vmatpush1.msra.mxu0 %v236
      %257 = vmatprep.subr.mxu0 0.0
      %258 = vmatpush1.msra.mxu0 %v237
      %259 = vmatprep.subr.mxu0 0.0
      %260 = vmatpush1.msra.mxu0 0.0
      %261 = vmatprep.subr.mxu0 0.0
      %262 = vmatpush1.msra.mxu0 0.0
      %263 = vmatprep.subr.mxu0 0.0
      %264 = vmatpush1.msra.mxu0 0.0
      %265 = vmatprep.subr.mxu0 0.0
      %266 = vmatpush1.msra.mxu0 0.0
      %267 = vmatprep.subr.mxu0 0.0
      %268 = vmatpush1.msra.mxu0 0.0
      %269 = vmatprep.subr.mxu0 0.0
      %270 = vmatpush1.msra.mxu0 0.0
      %271 = vmatprep.subr.mxu0 0.0
      %272 = vmatpush1.msra.mxu0 0.0
      %273 = vmatprep.subr.mxu0 0.0
      %274 = vmatpush1.msra.mxu0 0.0
      %275 = vmatprep.subr.mxu0 0.0
      %276 = vmatpush1.msra.mxu0 0.0
      %277 = vmatprep.subr.mxu0 0.0
      %278 = vmatpush1.msra.mxu0 0.0
      %279 = vmatprep.subr.mxu0 0.0
      %280 = vmatpush1.msra.mxu0 0.0
      %281 = vmatprep.subr.mxu0 0.0
      %282 = vmatpush1.msra.mxu0 0.0
      %283 = vmatprep.subr.mxu0 0.0
      %284 = vmatpush1.msra.mxu0 0.0
      %285 = vmatprep.subr.mxu0 0.0
      %286 = vmatpush1.msra.mxu0 0.0
      %287 = vmatprep.subr.mxu0 0.0
      %288 = vmatpush1.msra.mxu0 0.0
      %289 = vmatprep.subr.mxu0 0.0
      %290 = vmatpush1.msra.mxu0 0.0
      %291 = vmatprep.subr.mxu0 0.0
      %292 = vmatpush1.msra.mxu0 0.0
      %293 = vmatprep.subr.mxu0 0.0
      %294 = vmatpush1.msra.mxu0 0.0
      %295 = vmatprep.subr.mxu0 0.0
      %296 = vmatpush1.msra.mxu0 0.0
      %297 = vmatprep.subr.mxu0 0.0
      %298 = vmatpush1.msra.mxu0 0.0
      %299 = vmatprep.subr.mxu0 0.0
      %300 = vmatpush1.msra.mxu0 0.0
      %301 = vmatprep.subr.mxu0 0.0
      %302 = vmatpush1.msra.mxu0 0.0
      %303 = vmatprep.subr.mxu0 0.0
      %304 = vmatpush1.msra.mxu0 0.0
      %305 = vmatprep.subr.mxu0 0.0
      %306 = vmatpush1.msra.mxu0 0.0
      %307 = vmatprep.subr.mxu0 0.0
      %308 = vmatpush1.msra.mxu0 0.0
      %309 = vmatprep.subr.mxu0 0.0
      %310 = vmatpush1.msra.mxu0 0.0
      %311 = vmatprep.subr.mxu0 0.0
      %312 = vmatpush1.msra.mxu0 0.0
      %313 = vmatprep.subr.mxu0 0.0
      %314 = vmatpush1.msra.mxu0 0.0
      %315 = vmatprep.subr.mxu0 0.0
      %316 = vmatpush1.msra.mxu0 0.0
      %317 = vmatprep.subr.mxu0 0.0
      %318 = vmatpush1.msra.mxu0 0.0
      %319 = vmatprep.mubr.f32.mxu0 0.0
      %320 = vmatmul.mubr.f32.gmra.mrb[0].mxu0 %v244
      %v321 = vpop.f32.mrb[0].mxu0
      %v322 = vadd.f32 %v241, %v321
      %v323 = vpop.f32.mrb[0].mxu0
      %324 = vmatprep.mubr.f32.mxu0 0.0
      %325 = vmatmul.mubr.f32.gmra.mrb[0].mxu0 %v247
      %v326 = vpop.f32.mrb[0].mxu0
      %v327 = vadd.f32 %v241, %v326
      %v328 = vpop.f32.mrb[0].mxu0
      %329 = vmatprep.mubr.f32.mxu0 0.0
      %330 = vmatmul.mubr.f32.gmra.mrb[0].mxu0 %v250
      %v331 = vpop.f32.mrb[0].mxu0
      %v332 = vadd.f32 %v241, %v331
      %v333 = vpop.f32.mrb[0].mxu0
      %334 = vmatprep.mubr.f32.mxu0 0.0
      %335 = vmatmul.mubr.f32.gmra.mrb[0].mxu0 %v253
      %v336 = vpop.f32.mrb[0].mxu0
      %v337 = vadd.f32 %v241, %v336
      %v338 = vpop.f32.mrb[0].mxu0
      %339 = vdwg.mxu0
      %v340 = vmax.f32 %v322, 0.0
      %v341 = vmax.f32 %v327, 0.0
      %v342 = vmax.f32 %v332, 0.0
      %v343 = vmax.f32 %v337, 0.0
      %344 = vadd.xlane.f32.xlu0 %v340
      %v345 = vpop.xlane.xlu0 %344
      %346 = vadd.xlane.f32.xlu0 %v341
      %v347 = vpop.xlane.xlu0 %346
      %348 = vadd.xlane.f32.xlu0 %v342
      %v349 = vpop.xlane.xlu0 %348
      %350 = vadd.xlane.f32.xlu0 %v343
      %v351 = vpop.xlane.xlu0 %350
      %v352 = vmul.f32 %v345, 0.03125
      %v353 = vmul.f32 %v347, 0.03125
      %v354 = vmul.f32 %v349, 0.03125
      %v355 = vmul.f32 %v351, 0.03125
      %v356 = vsub.f32 %v340, %v352
      %v357 = vsub.f32 %v341, %v353
      %v358 = vsub.f32 %v342, %v354
      %v359 = vsub.f32 %v343, %v355
      %v360 = vsel %vm231, 1, 0
      %vm361 = vcmp.eq.s32.totalorder %v360, 1
      %v362 = vsel %vm361, %v356, 0.0
      %v363 = vsel %vm361, %v357, 0.0
      %v364 = vsel %vm361, %v358, 0.0
      %v365 = vsel %vm361, %v359, 0.0
      %v366 = vmul.f32 %v362, %v362
      %v367 = vmul.f32 %v363, %v363
      %v368 = vmul.f32 %v364, %v364
      %v369 = vmul.f32 %v365, %v365
      %370 = vadd.xlane.f32.xlu0 %v366
      %v371 = vpop.xlane.xlu0 %370
      %372 = vadd.xlane.f32.xlu0 %v367
      %v373 = vpop.xlane.xlu0 %372
      %374 = vadd.xlane.f32.xlu0 %v368
      %v375 = vpop.xlane.xlu0 %374
      %376 = vadd.xlane.f32.xlu0 %v369
      %v377 = vpop.xlane.xlu0 %376
      %v378 = vmul.f32 %v371, 0.03125
      %v379 = vmul.f32 %v373, 0.03125
      %v380 = vmul.f32 %v375, 0.03125
      %v381 = vmul.f32 %v377, 0.03125
      %v382 = vadd.f32 %v378, 1e-05
      %v383 = vadd.f32 %v379, 1e-05
      %v384 = vadd.f32 %v380, 1e-05
      %v385 = vadd.f32 %v381, 1e-05
      %v386 = vrsqrt.pop %v382
      %v387 = vrsqrt.pop %v383
      %v388 = vrsqrt.pop %v384
      %v389 = vrsqrt.pop %v385
      %v390 = vlaneseq
      %v391 = vshrl.u32 %v390, 7
      %v392 = vsub.s32 1, %v391
      %v393 = vrot.slane %v228, %v392
      %v394 = vmul.f32 %v393, %v386
      %v395 = vmul.f32 %v393, %v387
      %v396 = vmul.f32 %v393, %v388
      %v397 = vmul.f32 %v393, %v389
      %v398 = vmul.f32 %v362, %v394
      %v399 = vmul.f32 %v363, %v395
      %v400 = vmul.f32 %v364, %v396
      %v401 = vmul.f32 %v365, %v397
      %v402 = vlaneseq
      %v403 = vshrl.u32 %v402, 7
      %v404 = vsub.s32 2, %v403
      %v405 = vrot.slane %v228, %v404
      %v406 = vadd.f32 %v398, %v405
      %v407 = vadd.f32 %v399, %v405
      %v408 = vadd.f32 %v400, %v405
      %v409 = vadd.f32 %v401, %v405
      %v410 = vld [vmem:[%s2] sm:$0xff]
      %v411 = vld [vmem:[%s2 + $0x8] sm:$0xff]
      %v412 = vld [vmem:[%s2 + $0x10] sm:$0xff]
      %v413 = vld [vmem:[%s2 + $0x18] sm:$0xff]
      %v414 = vld [vmem:[%s2 + $0x20] sm:$0xff]
      %v415 = vld [vmem:[%s2 + $0x28] sm:$0xff]
      %v416 = vld [vmem:[%s2 + $0x30] sm:$0xff]
      %v417 = vld [vmem:[%s2 + $0x38] sm:$0xff]
      %v418 = vld [vmem:[%s2 + $0x40] sm:$0xff]
      %v419 = vld [vmem:[%s2 + $0x48] sm:$0xff]
      %v420 = vld [vmem:[%s2 + $0x50] sm:$0xff]
      %v421 = vld [vmem:[%s2 + $0x58] sm:$0xff]
      %v422 = vld [vmem:[%s2 + $0x60] sm:$0xff]
      %v423 = vld [vmem:[%s2 + $0x68] sm:$0xff]
      %v424 = vld [vmem:[%s2 + $0x70] sm:$0xff]
      %v425 = vld [vmem:[%s2 + $0x78] sm:$0xff]
      %v426 = vlaneseq
      %v427 = vshrl.u32 %v426, 7
      %v428 = vsub.s32 3, %v427
      %v429 = vrot.slane %v228, %v428
      %430 = vmatprep.subr.mxu0 0.0
      %431 = vmatpush1.msra.mxu0 %v410
      %432 = vmatprep.subr.mxu0 0.0
      %433 = vmatpush1.msra.mxu0 %v411
      %434 = vmatprep.subr.mxu0 0.0
      %435 = vmatpush1.msra.mxu0 %v412
      %436 = vmatprep.subr.mxu0 0.0
      %437 = vmatpush1.msra.mxu0 %v413
      %438 = vmatprep.subr.mxu0 0.0
      %439 = vmatpush1.msra.mxu0 %v414
      %440 = vmatprep.subr.mxu0 0.0
      %441 = vmatpush1.msra.mxu0 %v415
      %442 = vmatprep.subr.mxu0 0.0
      %443 = vmatpush1.msra.mxu0 %v416
      %444 = vmatprep.subr.mxu0 0.0
      %445 = vmatpush1.msra.mxu0 %v417
      %446 = vmatprep.subr.mxu0 0.0
      %447 = vmatpush1.msra.mxu0 %v418
      %448 = vmatprep.subr.mxu0 0.0
      %449 = vmatpush1.msra.mxu0 %v419
      %450 = vmatprep.subr.mxu0 0.0
      %451 = vmatpush1.msra.mxu0 %v420
      %452 = vmatprep.subr.mxu0 0.0
      %453 = vmatpush1.msra.mxu0 %v421
      %454 = vmatprep.subr.mxu0 0.0
      %455 = vmatpush1.msra.mxu0 %v422
      %456 = vmatprep.subr.mxu0 0.0
      %457 = vmatpush1.msra.mxu0 %v423
      %458 = vmatprep.subr.mxu0 0.0
      %459 = vmatpush1.msra.mxu0 %v424
      %460 = vmatprep.subr.mxu0 0.0
      %461 = vmatpush1.msra.mxu0 %v425
      %462 = vmatprep.subr.mxu0 0.0
      %463 = vmatpush1.msra.mxu0 0.0
      %464 = vmatprep.subr.mxu0 0.0
      %465 = vmatpush1.msra.mxu0 0.0
      %466 = vmatprep.subr.mxu0 0.0
      %467 = vmatpush1.msra.mxu0 0.0
      %468 = vmatprep.subr.mxu0 0.0
      %469 = vmatpush1.msra.mxu0 0.0
      %470 = vmatprep.subr.mxu0 0.0
      %471 = vmatpush1.msra.mxu0 0.0
      %472 = vmatprep.subr.mxu0 0.0
      %473 = vmatpush1.msra.mxu0 0.0
      %474 = vmatprep.subr.mxu0 0.0
      %475 = vmatpush1.msra.mxu0 0.0
      %476 = vmatprep.subr.mxu0 0.0
      %477 = vmatpush1.msra.mxu0 0.0
      %478 = vmatprep.subr.mxu0 0.0
      %479 = vmatpush1.msra.mxu0 0.0
      %480 = vmatprep.subr.mxu0 0.0
      %481 = vmatpush1.msra.mxu0 0.0
      %482 = vmatprep.subr.mxu0 0.0
      %483 = vmatpush1.msra.mxu0 0.0
      %484 = vmatprep.subr.mxu0 0.0
      %485 = vmatpush1.msra.mxu0 0.0
      %486 = vmatprep.subr.mxu0 0.0
      %487 = vmatpush1.msra.mxu0 0.0
      %488 = vmatprep.subr.mxu0 0.0
      %489 = vmatpush1.msra.mxu0 0.0
      %490 = vmatprep.subr.mxu0 0.0
      %491 = vmatpush1.msra.mxu0 0.0
      %492 = vmatprep.subr.mxu0 0.0
      %493 = vmatpush1.msra.mxu0 0.0
      %494 = vmatprep.mubr.f32.mxu0 0.0
      %495 = vmatmul.mubr.f32.gmra.mrb[0].mxu0 %v406
      %v496 = vpop.f32.mrb[0].mxu0
      %v497 = vadd.f32 %v429, %v496
      %v498 = vpop.f32.mrb[0].mxu0
      %499 = vmatprep.mubr.f32.mxu0 0.0
      %500 = vmatmul.mubr.f32.gmra.mrb[0].mxu0 %v407
      %v501 = vpop.f32.mrb[0].mxu0
      %v502 = vadd.f32 %v429, %v501
      %v503 = vpop.f32.mrb[0].mxu0
      %504 = vmatprep.mubr.f32.mxu0 0.0
      %505 = vmatmul.mubr.f32.gmra.mrb[0].mxu0 %v408
      %v506 = vpop.f32.mrb[0].mxu0
      %v507 = vadd.f32 %v429, %v506
      %v508 = vpop.f32.mrb[0].mxu0
      %509 = vmatprep.mubr.f32.mxu0 0.0
      %510 = vmatmul.mubr.f32.gmra.mrb[0].mxu0 %v409
      %v511 = vpop.f32.mrb[0].mxu0
      %v512 = vadd.f32 %v429, %v511
      %v513 = vpop.f32.mrb[0].mxu0
      %514 = vdwg.mxu0
      %v515 = vmax.f32 %v497, 0.0
      %v516 = vmax.f32 %v502, 0.0
      %v517 = vmax.f32 %v507, 0.0
      %v518 = vmax.f32 %v512, 0.0
      %519 = vadd.xlane.f32.xlu0 %v515
      %v520 = vpop.xlane.xlu0 %519
      %521 = vadd.xlane.f32.xlu0 %v516
      %v522 = vpop.xlane.xlu0 %521
      %523 = vadd.xlane.f32.xlu0 %v517
      %v524 = vpop.xlane.xlu0 %523
      %525 = vadd.xlane.f32.xlu0 %v518
      %v526 = vpop.xlane.xlu0 %525
      %v527 = vmul.f32 %v520, 0.03125
      %v528 = vmul.f32 %v522, 0.03125
      %v529 = vmul.f32 %v524, 0.03125
      %v530 = vmul.f32 %v526, 0.03125
      %v531 = vsub.f32 %v515, %v527
      %v532 = vsub.f32 %v516, %v528
      %v533 = vsub.f32 %v517, %v529
      %v534 = vsub.f32 %v518, %v530
      %v535 = vsel %vm361, %v531, 0.0
      %v536 = vsel %vm361, %v532, 0.0
      %v537 = vsel %vm361, %v533, 0.0
      %v538 = vsel %vm361, %v534, 0.0
      %v539 = vmul.f32 %v535, %v535
      %v540 = vmul.f32 %v536, %v536
      %v541 = vmul.f32 %v537, %v537
      %v542 = vmul.f32 %v538, %v538
      %543 = vadd.xlane.f32.xlu0 %v539
      %v544 = vpop.xlane.xlu0 %543
      %545 = vadd.xlane.f32.xlu0 %v540
      %v546 = vpop.xlane.xlu0 %545
      %547 = vadd.xlane.f32.xlu0 %v541
      %v548 = vpop.xlane.xlu0 %547
      %549 = vadd.xlane.f32.xlu0 %v542
      %v550 = vpop.xlane.xlu0 %549
      %v551 = vmul.f32 %v544, 0.03125
      %v552 = vmul.f32 %v546, 0.03125
      %v553 = vmul.f32 %v548, 0.03125
      %v554 = vmul.f32 %v550, 0.03125
      %v555 = vadd.f32 %v551, 1e-05
      %v556 = vadd.f32 %v552, 1e-05
      %v557 = vadd.f32 %v553, 1e-05
      %v558 = vadd.f32 %v554, 1e-05
      %v559 = vrsqrt.pop %v555
      %v560 = vrsqrt.pop %v556
      %v561 = vrsqrt.pop %v557
      %v562 = vrsqrt.pop %v558
      %v563 = vlaneseq
      %v564 = vshrl.u32 %v563, 7
      %v565 = vsub.s32 4, %v564
      %v566 = vrot.slane %v228, %v565
      %v567 = vmul.f32 %v566, %v559
      %v568 = vmul.f32 %v566, %v560
      %v569 = vmul.f32 %v566, %v561
      %v570 = vmul.f32 %v566, %v562
      %v571 = vmul.f32 %v535, %v567
      %v572 = vmul.f32 %v536, %v568
      %v573 = vmul.f32 %v537, %v569
      %v574 = vmul.f32 %v538, %v570
      %v575 = vlaneseq
      %v576 = vshrl.u32 %v575, 7
      %v577 = vsub.s32 5, %v576
      %v578 = vrot.slane %v228, %v577
      %v579 = vadd.f32 %v571, %v578
      %v580 = vadd.f32 %v572, %v578
      %v581 = vadd.f32 %v573, %v578
      %v582 = vadd.f32 %v574, %v578
      %v583 = vld [vmem:[%s3] sm:$0xff]
      %v584 = vld [vmem:[%s3 + $0x8] sm:$0xff]
      %v585 = vld [vmem:[%s3 + $0x10] sm:$0xff]
      %v586 = vld [vmem:[%s3 + $0x18] sm:$0xff]
      %v587 = vld [vmem:[%s3 + $0x20] sm:$0xff]
      %v588 = vld [vmem:[%s3 + $0x28] sm:$0xff]
      %v589 = vld [vmem:[%s3 + $0x30] sm:$0xff]
      %v590 = vld [vmem:[%s3 + $0x38] sm:$0xff]
      %v591 = vld [vmem:[%s3 + $0x40] sm:$0xff]
      %v592 = vld [vmem:[%s3 + $0x48] sm:$0xff]
      %v593 = vld [vmem:[%s3 + $0x50] sm:$0xff]
      %v594 = vld [vmem:[%s3 + $0x58] sm:$0xff]
      %v595 = vld [vmem:[%s3 + $0x60] sm:$0xff]
      %v596 = vld [vmem:[%s3 + $0x68] sm:$0xff]
      %v597 = vld [vmem:[%s3 + $0x70] sm:$0xff]
      %v598 = vld [vmem:[%s3 + $0x78] sm:$0xff]
      %v599 = vlaneseq
      %v600 = vshrl.u32 %v599, 7
      %v601 = vsub.s32 6, %v600
      %v602 = vrot.slane %v228, %v601
      %603 = vmatprep.subr.mxu0 0.0
      %604 = vmatpush1.msra.mxu0 %v583
      %605 = vmatprep.subr.mxu0 0.0
      %606 = vmatpush1.msra.mxu0 %v584
      %607 = vmatprep.subr.mxu0 0.0
      %608 = vmatpush1.msra.mxu0 %v585
      %609 = vmatprep.subr.mxu0 0.0
      %610 = vmatpush1.msra.mxu0 %v586
      %611 = vmatprep.subr.mxu0 0.0
      %612 = vmatpush1.msra.mxu0 %v587
      %613 = vmatprep.subr.mxu0 0.0
      %614 = vmatpush1.msra.mxu0 %v588
      %615 = vmatprep.subr.mxu0 0.0
      %616 = vmatpush1.msra.mxu0 %v589
      %617 = vmatprep.subr.mxu0 0.0
      %618 = vmatpush1.msra.mxu0 %v590
      %619 = vmatprep.subr.mxu0 0.0
      %620 = vmatpush1.msra.mxu0 %v591
      %621 = vmatprep.subr.mxu0 0.0
      %622 = vmatpush1.msra.mxu0 %v592
      %623 = vmatprep.subr.mxu0 0.0
      %624 = vmatpush1.msra.mxu0 %v593
      %625 = vmatprep.subr.mxu0 0.0
      %626 = vmatpush1.msra.mxu0 %v594
      %627 = vmatprep.subr.mxu0 0.0
      %628 = vmatpush1.msra.mxu0 %v595
      %629 = vmatprep.subr.mxu0 0.0
      %630 = vmatpush1.msra.mxu0 %v596
      %631 = vmatprep.subr.mxu0 0.0
      %632 = vmatpush1.msra.mxu0 %v597
      %633 = vmatprep.subr.mxu0 0.0
      %634 = vmatpush1.msra.mxu0 %v598
      %635 = vmatprep.subr.mxu0 0.0
      %636 = vmatpush1.msra.mxu0 0.0
      %637 = vmatprep.subr.mxu0 0.0
      %638 = vmatpush1.msra.mxu0 0.0
      %639 = vmatprep.subr.mxu0 0.0
      %640 = vmatpush1.msra.mxu0 0.0
      %641 = vmatprep.subr.mxu0 0.0
      %642 = vmatpush1.msra.mxu0 0.0
      %643 = vmatprep.subr.mxu0 0.0
      %644 = vmatpush1.msra.mxu0 0.0
      %645 = vmatprep.subr.mxu0 0.0
      %646 = vmatpush1.msra.mxu0 0.0
      %647 = vmatprep.subr.mxu0 0.0
      %648 = vmatpush1.msra.mxu0 0.0
      %649 = vmatprep.subr.mxu0 0.0
      %650 = vmatpush1.msra.mxu0 0.0
      %651 = vmatprep.subr.mxu0 0.0
      %652 = vmatpush1.msra.mxu0 0.0
      %653 = vmatprep.subr.mxu0 0.0
      %654 = vmatpush1.msra.mxu0 0.0
      %655 = vmatprep.subr.mxu0 0.0
      %656 = vmatpush1.msra.mxu0 0.0
      %657 = vmatprep.subr.mxu0 0.0
      %658 = vmatpush1.msra.mxu0 0.0
      %659 = vmatprep.subr.mxu0 0.0
      %660 = vmatpush1.msra.mxu0 0.0
      %661 = vmatprep.subr.mxu0 0.0
      %662 = vmatpush1.msra.mxu0 0.0
      %663 = vmatprep.subr.mxu0 0.0
      %664 = vmatpush1.msra.mxu0 0.0
      %665 = vmatprep.subr.mxu0 0.0
      %666 = vmatpush1.msra.mxu0 0.0
      %667 = vmatprep.mubr.f32.mxu0 0.0
      %668 = vmatmul.mubr.f32.gmra.mrb[0].mxu0 %v579
      %v669 = vpop.f32.mrb[0].mxu0
      %v670 = vadd.f32 %v602, %v669
      %v671 = vpop.f32.mrb[0].mxu0
      %672 = vmatprep.mubr.f32.mxu0 0.0
      %673 = vmatmul.mubr.f32.gmra.mrb[0].mxu0 %v580
      %v674 = vpop.f32.mrb[0].mxu0
      %v675 = vadd.f32 %v602, %v674
      %v676 = vpop.f32.mrb[0].mxu0
      %677 = vmatprep.mubr.f32.mxu0 0.0
      %678 = vmatmul.mubr.f32.gmra.mrb[0].mxu0 %v581
      %v679 = vpop.f32.mrb[0].mxu0
      %v680 = vadd.f32 %v602, %v679
      %v681 = vpop.f32.mrb[0].mxu0
      %682 = vmatprep.mubr.f32.mxu0 0.0
      %683 = vmatmul.mubr.f32.gmra.mrb[0].mxu0 %v582
      %v684 = vpop.f32.mrb[0].mxu0
      %v685 = vadd.f32 %v602, %v684
      %v686 = vpop.f32.mrb[0].mxu0
      %687 = vdwg.mxu0
      %vm688 = vcmask 64512
      %689 = vst.msk [vmem:[%s226] sm:$0xff] %vm688, %v670
      %690 = vst.msk [vmem:[%s226 + $0x8] sm:$0xff] %vm688, %v675
      %691 = vst.msk [vmem:[%s226 + $0x10] sm:$0xff] %vm688, %v680
      %692 = vst.msk [vmem:[%s226 + $0x18] sm:$0xff] %vm688, %v685
      %s693 = smul.u32 4, %s16
      %p694 = scmp.lt.s32.totalorder %s693, 7
      %s695 = scalar_select %p694, %s693, 7
      %s696 = smul.addr %s695, 8
      %s697 = scalar_lea.vmem %s5, %s696
      // Predicated region
      $region41: #{tpu_custom_call.1} parent=39 // pred_check
        %p698 = pneg %p144
      $region42: #{tpu_custom_call.1} parent=39 // pred_check_branch
        %700 = sbr.rel (%p698) target = $region44
      $region43: #{tpu_custom_call.1} parent=39 // pred_region
        %s701 = smul.u32 4, %s16
      $region44: #{tpu_custom_call.1} parent=39 // pred_fallthru
        _
    $region40: #{tpu_custom_call.1} parent=5 // pred_fallthru
      _
    %p702 = scmp.le.s32.totalorder 2, %s11
    // Predicated region
    $region45: #{tpu_custom_call.1} parent=5 // pred_check
      %p703 = pneg %p702
    $region46: #{tpu_custom_call.1} parent=5 // pred_check_branch
      %705 = sbr.rel (%p703) target = $region48
    $region47: #{tpu_custom_call.1} parent=5 // pred_region
      %s706 = ssub.s32 %s11, 2
      // Predicated region
      $region49: #{tpu_custom_call.1} parent=47 // pred_check
        %p707 = pneg %p150
      $region50: #{tpu_custom_call.1} parent=47 // pred_check_branch
        %709 = sbr.rel (%p707) target = $region52
      $region51: #{tpu_custom_call.1} parent=47 // pred_region
        %s710 = smul.u32 4, %s17
        %p711 = scmp.lt.s32.totalorder %s710, 7
        %s712 = scalar_select %p711, %s710, 7
        %s713 = smul.addr %s712, 8
        %s714 = scalar_lea.vmem %s5, %s713
      $region52: #{tpu_custom_call.1} parent=47 // pred_fallthru
        _
    $region48: #{tpu_custom_call.1} parent=5 // pred_fallthru
      _
  $region6: #{tpu_custom_call.1} parent=0 // loop_footer
    %s15 = sadd.s32 1, %s11
  $region7: #{tpu_custom_call.1} parent=0 // loop_footer_branch
    %10 = sbr.rel target = $region3
  $region8: #{tpu_custom_call.1} parent=0 // loop_exit
    _

</llo_original>
